<compile_context>
chip_gen: v7x
topology: tpu7x:2x2x1
jax: 0.10.0
libtpu: 0.0.40
codegen_flags: <defaults>
</compile_context>

<pallas_src>
import jax
import jax.numpy as jnp
from jax.experimental import pallas as pl
from jax.experimental.pallas import tpu as pltpu


def _srlnbc_kernel(obs_t_ref, act_t_ref, w_t_ref, b_ref, vec_ref, scal_ref,
                   out_ref, acc_ref):
    i = pl.program_id(0)
    last = pl.num_programs(0) - 1

    lane8 = jax.lax.broadcasted_iota(jnp.int32, (1, 8), 1)

    def pack8(vals):
        out = jnp.zeros((1, 8), jnp.float32)
        for k, v in enumerate(vals):
            out = out + jnp.where(lane8 == k, v, jnp.float32(0.0))
        return out

    def unpack8(v, k):
        return jnp.sum(jnp.where(lane8 == k, v, jnp.float32(0.0)))

    @pl.when(i == 0)
    def _():
        acc_ref[...] = jnp.zeros_like(acc_ref)

    gamma_barrier = scal_ref[0, 1]
    eps = scal_ref[0, 2]

    # ---- fused policy forward: ONE MXU matmul yields both policies' means ----
    obs_t = obs_t_ref[...]                                       # (d_obs, bt)
    means = jnp.dot(w_t_ref[...], obs_t,
                    preferred_element_type=jnp.float32)
    means = means + b_ref[...].astype(jnp.float32)               # (2*d_act, bt)
    d_act = act_t_ref.shape[0]
    act_t = act_t_ref[...].astype(jnp.float32)                   # (d_act, bt)
    dc = act_t - means[:d_act, :]                                # current policy
    do = act_t - means[d_act:, :]                                # old policy
    # lp_cur - lp_old = 0.5 * sum_a (do^2 - dc^2), kept lane-dense as (1, bt)
    delta_lp = 0.5 * jnp.sum(do * do - dc * dc, axis=0, keepdims=True)
    iw = jnp.clip(jnp.exp(delta_lp), 0.1, 10.0)                  # (1, bt)

    # ---- barrier terms on the packed, sublane-dense (8, bt) block -------------
    vec = vec_ref[...].astype(jnp.float32)
    bv, nbv = vec[0:1, :], vec[1:2, :]
    feas, infeas = vec[2:3, :], vec[3:4, :]
    ep, valid = vec[4:5, :], vec[5:6, :]

    partial = pack8([
        jnp.sum(valid * iw),                                               # iw sum
        jnp.sum(feas * jnp.maximum(eps + bv, 0.0)),                        # feasible num
        jnp.sum(feas),                                                     # feasible cnt
        jnp.sum(infeas * jnp.maximum(eps - bv, 0.0)),                      # infeasible num
        jnp.sum(infeas),                                                   # infeasible cnt
        jnp.sum(ep * jnp.maximum(eps + nbv - gamma_barrier * bv, 0.0)),    # invariant num
        jnp.sum(ep),                                                       # invariant cnt
    ])
    acc_ref[...] += partial

    @pl.when(i == last)
    def _():
        lambda_barrier = scal_ref[0, 0]
        actor_loss = scal_ref[0, 3]
        lagrange = scal_ref[0, 4]
        lambda_lr = scal_ref[0, 5]
        inv_batch = scal_ref[0, 6]

        acc = acc_ref[...]
        denom_eps = jnp.float32(1e-8)
        importance_weights = unpack8(acc, 0) * inv_batch
        feasible_loss = unpack8(acc, 1) / (unpack8(acc, 2) + denom_eps)
        infeasible_loss = unpack8(acc, 3) / (unpack8(acc, 4) + denom_eps)
        invariant_loss = unpack8(acc, 5) / (unpack8(acc, 6) + denom_eps)
        barrier_loss = (feasible_loss + infeasible_loss
                        + lambda_barrier * invariant_loss)

        # Matches SRLNBCLoss.forward: penalty = mean(iw) * invariant_loss,
        # total = actor_loss + lagrange * penalty,
        # lagrange <- max(lagrange + lambda_lr * total, 0)
        barrier_penalty = importance_weights * invariant_loss
        total_loss = actor_loss + lagrange * barrier_penalty
        new_lagrange = jnp.maximum(lagrange + lambda_lr * total_loss, 0.0)

        out_ref[...] = pack8([
            total_loss, barrier_loss, feasible_loss, infeasible_loss,
            invariant_loss, barrier_penalty, importance_weights, new_lagrange,
        ])


def srlnbc_loss(
    barrier_values, next_barrier_values,
    feasible_mask, infeasible_mask, episode_mask,
    observations, actions,
    w_cur, b_cur, w_old, b_old,
    actor_loss, critic_loss,
    lagrange_multiplier,
    *, lambda_barrier=0.1, gamma_barrier=0.99, barrier_eps=0.01, lambda_lr=0.001,
    block_b=1024,
):
    B, d_obs = observations.shape
    d_act = actions.shape[1]
    f32 = jnp.float32

    # ---- B tiling on the lane axis (keeps VMEM bounded on v5e/v6e/v7x) -------
    if B > block_b:
        b_tile = block_b                                   # multiple of 128
        b_pad = ((B + b_tile - 1) // b_tile) * b_tile
    else:
        b_tile = B                                          # single full block
        b_pad = B
    num_tiles = b_pad // b_tile

    def pad_lanes(x):
        extra = b_pad - x.shape[-1]
        return x if extra == 0 else jnp.pad(x, ((0, 0), (0, extra)))

    # Native-dtype, B-on-lanes layouts for the fused policy matmul.
    obs_t = pad_lanes(observations.T)                       # (d_obs, b_pad)
    act_t = pad_lanes(actions.T)                            # (d_act, b_pad)
    w_fused_t = jnp.concatenate([w_cur.T, w_old.T], axis=0)  # (2*d_act, d_obs)
    b_fused = jnp.concatenate(
        [jnp.ravel(b_cur), jnp.ravel(b_old)]).reshape(2 * d_act, 1)

    # Pack all per-sample vectors into one sublane-dense (8, b_pad) block.
    zeros_b = jnp.zeros((B,), f32)
    vec = jnp.stack([
        barrier_values.astype(f32).reshape(B),
        next_barrier_values.astype(f32).reshape(B),
        feasible_mask.astype(f32).reshape(B),
        infeasible_mask.astype(f32).reshape(B),
        episode_mask.astype(f32).reshape(B),
        jnp.ones((B,), f32),                                 # validity (lane padding mask)
        zeros_b, zeros_b,
    ])
    vec = pad_lanes(vec)                                     # (8, b_pad)

    # Single-shot scalar config block (lives in SMEM, fetched once).
    scalars = jnp.stack([
        jnp.asarray(lambda_barrier, f32),
        jnp.asarray(gamma_barrier, f32),
        jnp.asarray(barrier_eps, f32),
        jnp.asarray(actor_loss, f32),
        jnp.asarray(lagrange_multiplier, f32),
        jnp.asarray(lambda_lr, f32),
        jnp.asarray(1.0 / B, f32),
        jnp.asarray(0.0, f32),
    ]).reshape(1, 8)

    out = pl.pallas_call(
        _srlnbc_kernel,
        out_shape=jax.ShapeDtypeStruct((1, 8), f32),
        grid=(num_tiles,),
        in_specs=[
            pl.BlockSpec((d_obs, b_tile), lambda i: (0, i)),       # obs^T
            pl.BlockSpec((d_act, b_tile), lambda i: (0, i)),       # act^T
            pl.BlockSpec((2 * d_act, d_obs), lambda i: (0, 0)),    # fused W^T
            pl.BlockSpec((2 * d_act, 1), lambda i: (0, 0)),        # fused bias
            pl.BlockSpec((8, b_tile), lambda i: (0, i)),           # packed vectors
            pl.BlockSpec((1, 8), lambda i: (0, 0),
                         memory_space=pltpu.SMEM),                 # scalar config
        ],
        out_specs=pl.BlockSpec((1, 8), lambda i: (0, 0)),
        scratch_shapes=[pltpu.VMEM((1, 8), f32)],
        compiler_params=pltpu.CompilerParams(
            dimension_semantics=("arbitrary",)),
    )(obs_t, act_t, w_fused_t, b_fused, vec, scalars)

    (total_loss, barrier_loss, feasible_loss, infeasible_loss,
     invariant_loss, barrier_penalty, importance_weights,
     new_lagrange) = [out[0, k] for k in range(8)]

    loss_info = {
        "total_loss": total_loss,
        "policy_loss": jnp.asarray(actor_loss, f32),
        "value_loss": jnp.asarray(critic_loss, f32),
        "barrier_loss": barrier_loss,
        "barrier_penalty": barrier_penalty,
        "feasible_loss": feasible_loss,
        "infeasible_loss": infeasible_loss,
        "invariant_loss": invariant_loss,
        "importance_weights": importance_weights,
        "lagrange_multiplier": new_lagrange,
    }
    return total_loss, barrier_loss, new_lagrange, loss_info


def _srlnbc_loss_ref(barrier_values, next_barrier_values,
                     feasible_mask, infeasible_mask, episode_mask,
                     observations, actions,
                     w_cur, b_cur, w_old, b_old,
                     actor_loss, lagrange_multiplier,
                     *, lambda_barrier, gamma_barrier, barrier_eps, lambda_lr):
    """Pure-JAX reference mirroring the kernel math (for correctness checks)."""
    f32 = jnp.float32
    obs = observations.astype(f32)
    act = actions.astype(f32)
    mean_c = obs @ w_cur.astype(f32) + jnp.ravel(b_cur).astype(f32)
    mean_o = obs @ w_old.astype(f32) + jnp.ravel(b_old).astype(f32)
    lp_c = -0.5 * jnp.sum((act - mean_c) ** 2, axis=-1)
    lp_o = -0.5 * jnp.sum((act - mean_o) ** 2, axis=-1)
    iw = jnp.clip(jnp.exp(lp_c - lp_o), 0.1, 10.0).mean()

    bv = barrier_values.astype(f32).reshape(-1)
    nbv = next_barrier_values.astype(f32).reshape(-1)
    feas = feasible_mask.astype(f32).reshape(-1)
    infeas = infeasible_mask.astype(f32).reshape(-1)
    ep = episode_mask.astype(f32).reshape(-1)
    deps = jnp.float32(1e-8)
    feasible = jnp.sum(feas * jnp.maximum(barrier_eps + bv, 0.0)) / (jnp.sum(feas) + deps)
    infeasible = jnp.sum(infeas * jnp.maximum(barrier_eps - bv, 0.0)) / (jnp.sum(infeas) + deps)
    invariant = (jnp.sum(ep * jnp.maximum(barrier_eps + nbv - gamma_barrier * bv, 0.0))
                 / (jnp.sum(ep) + deps))
    barrier_loss = feasible + infeasible + lambda_barrier * invariant
    penalty = iw * invariant
    total = jnp.asarray(actor_loss, f32) + jnp.asarray(lagrange_multiplier, f32) * penalty
    new_lag = jnp.maximum(jnp.asarray(lagrange_multiplier, f32) + lambda_lr * total, 0.0)
    return total, barrier_loss, new_lag


def _run_case(key, B, D_OBS, D_ACT, block_b):
    ks = jax.random.split(key, 12)
    observations = jax.random.normal(ks[0], (B, D_OBS), jnp.float32)
    actions = jax.random.normal(ks[1], (B, D_ACT), jnp.float32)

    # Deterministic "policy networks": simple linear policies (mean = obs @ W + b).
    w_cur = 0.05 * jax.random.normal(ks[2], (D_OBS, D_ACT), jnp.float32)
    b_cur = 0.01 * jax.random.normal(ks[3], (D_ACT,), jnp.float32)
    w_old = w_cur + 0.02 * jax.random.normal(ks[4], (D_OBS, D_ACT), jnp.float32)
    b_old = b_cur + 0.01 * jax.random.normal(ks[5], (D_ACT,), jnp.float32)

    barrier_values = jax.random.normal(ks[6], (B,), jnp.float32)
    next_barrier_values = jax.random.normal(ks[7], (B,), jnp.float32)
    feasible_mask = (jax.random.uniform(ks[8], (B,)) > 0.5).astype(jnp.float32)
    infeasible_mask = 1.0 - feasible_mask
    episode_mask = (jax.random.uniform(ks[9], (B,)) > 0.2).astype(jnp.float32)

    actor_loss = jnp.float32(0.37)
    critic_loss = jnp.float32(0.52)
    lagrange_multiplier = jnp.float32(1.0)   # nn.Parameter init value in the module

    hyper = dict(lambda_barrier=0.1, gamma_barrier=0.99,
                 barrier_eps=0.01, lambda_lr=0.001)

    total_loss, barrier_loss, new_lagrange, info = srlnbc_loss(
        barrier_values, next_barrier_values,
        feasible_mask, infeasible_mask, episode_mask,
        observations, actions,
        w_cur, b_cur, w_old, b_old,
        actor_loss, critic_loss, lagrange_multiplier,
        block_b=block_b, **hyper,
    )
    jax.block_until_ready((total_loss, barrier_loss, new_lagrange))

    ref_total, ref_barrier, ref_lag = _srlnbc_loss_ref(
        barrier_values, next_barrier_values,
        feasible_mask, infeasible_mask, episode_mask,
        observations, actions,
        w_cur, b_cur, w_old, b_old,
        actor_loss, lagrange_multiplier, **hyper,
    )
    ok = (jnp.allclose(total_loss, ref_total, rtol=1e-3, atol=1e-3)
          & jnp.allclose(barrier_loss, ref_barrier, rtol=1e-3, atol=1e-3)
          & jnp.allclose(new_lagrange, ref_lag, rtol=1e-3, atol=1e-3))
    return bool(ok)


if __name__ == "__main__":
    key = jax.random.PRNGKey(0)
    k1, k2 = jax.random.split(key)

    # Small single-tile case (B fits in one lane block).
    ok1 = _run_case(k1, B=8, D_OBS=32, D_ACT=8, block_b=1024)
    # Multi-tile case exercising the grid accumulator + lane padding
    # (B=300 > block_b=128 -> 3 lane tiles of 128 with 84 padded lanes).
    ok2 = _run_case(k2, B=300, D_OBS=32, D_ACT=8, block_b=128)

    if ok1 and ok2:
        print("KERNEL_OK")
    else:
        print("KERNEL_MISMATCH", ok1, ok2)
</pallas_src>

<mosaic_0001>
module attributes {stable_mosaic.version = 11 : i64} {
  func.func @_srlnbc_kernel(%arg0: i32, %arg1: memref<32x8xf32, #tpu.memory_space<vmem>>, %arg2: memref<8x8xf32, #tpu.memory_space<vmem>>, %arg3: memref<16x32xf32, #tpu.memory_space<vmem>>, %arg4: memref<16x1xf32, #tpu.memory_space<vmem>>, %arg5: memref<8x8xf32, #tpu.memory_space<vmem>>, %arg6: memref<1x8xf32, #tpu.memory_space<smem>>, %arg7: memref<1x8xf32, #tpu.memory_space<vmem>>, %arg8: memref<1x8xf32, #tpu.memory_space<vmem>>) attributes {dimension_semantics = [#tpu.dimension_semantics<arbitrary>], iteration_bounds = array<i64: 1>, scalar_prefetch = 0 : i64, scratch_operands = 1 : i64, tpu.core_type = #tpu.core_type<tc>, window_params = [{transform_indices = @transform_0, window_bounds = array<i64: 32, 8>}, {transform_indices = @transform_1, window_bounds = array<i64: 8, 8>}, {pipeline_mode = #tpu.pipeline_mode<synchronous>, transform_indices = @transform_2, window_bounds = array<i64: 16, 32>}, {pipeline_mode = #tpu.pipeline_mode<synchronous>, transform_indices = @transform_3, window_bounds = array<i64: 16, 1>}, {transform_indices = @transform_4, window_bounds = array<i64: 8, 8>}, {transform_indices = @transform_5, window_bounds = array<i64: 1, 8>}, {pipeline_mode = #tpu.pipeline_mode<synchronous>, transform_indices = @transform_6, window_bounds = array<i64: 1, 8>}]} {
    %0 = tpu.iota {dimensions = array<i32: 1>} : vector<1x8xi32>
    %c0_i32 = arith.constant 0 : i32
    %1 = arith.cmpi eq, %arg0, %c0_i32 : i32
    %2 = arith.extui %1 : i1 to i32
    %c0_i32_0 = arith.constant 0 : i32
    %3 = arith.cmpi ne, %2, %c0_i32_0 : i32
    scf.if %3 {
      %cst_41 = arith.constant 0.000000e+00 : f32
      %132 = vector.broadcast %cst_41 : f32 to vector<1x8xf32>
      %c0_42 = arith.constant 0 : index
      %c0_43 = arith.constant 0 : index
      %133 = vector.load %arg8[%c0_42, %c0_43] : memref<1x8xf32, #tpu.memory_space<vmem>>, vector<1x8xf32>
      tpu.vector_store %arg8[%c0_42, %c0_43], %132 {strides = array<i32>} : memref<1x8xf32, #tpu.memory_space<vmem>>, vector<1x8xf32>,
    } else {
    }
    %c0 = arith.constant 0 : index
    %c1 = arith.constant 1 : index
    %4 = memref.load %arg6[%c0, %c1] : memref<1x8xf32, #tpu.memory_space<smem>>
    %c0_1 = arith.constant 0 : index
    %c2 = arith.constant 2 : index
    %5 = memref.load %arg6[%c0_1, %c2] : memref<1x8xf32, #tpu.memory_space<smem>>
    %c0_2 = arith.constant 0 : index
    %c0_3 = arith.constant 0 : index
    %6 = vector.load %arg1[%c0_2, %c0_3] : memref<32x8xf32, #tpu.memory_space<vmem>>, vector<32x8xf32>
    %c0_4 = arith.constant 0 : index
    %c0_5 = arith.constant 0 : index
    %7 = vector.load %arg3[%c0_4, %c0_5] : memref<16x32xf32, #tpu.memory_space<vmem>>, vector<16x32xf32>
    %cst = arith.constant dense<0.000000e+00> : vector<16x8xf32>
    %8 = tpu.matmul %7, %6, %cst {dimension_numbers = #tpu.dot_dimension_numbers<[1], [0], [0], [1], [0, 0, 1, 1], [], []>} : vector<16x32xf32>, vector<32x8xf32>, vector<16x8xf32> -> vector<16x8xf32>
    %c0_6 = arith.constant 0 : index
    %c0_7 = arith.constant 0 : index
    %9 = vector.load %arg4[%c0_6, %c0_7] : memref<16x1xf32, #tpu.memory_space<vmem>>, vector<16x1xf32>
    %10 = vector.broadcast %9 : vector<16x1xf32> to vector<16x8xf32>
    %11 = arith.addf %8, %10 : vector<16x8xf32>
    %c0_8 = arith.constant 0 : index
    %c0_9 = arith.constant 0 : index
    %12 = vector.load %arg2[%c0_8, %c0_9] : memref<8x8xf32, #tpu.memory_space<vmem>>, vector<8x8xf32>
    %13 = vector.extract_strided_slice %11 {offsets = [0, 0], sizes = [8, 8], strides = [1, 1]} : vector<16x8xf32> to vector<8x8xf32>
    %14 = arith.subf %12, %13 : vector<8x8xf32>
    %15 = vector.extract_strided_slice %11 {offsets = [8, 0], sizes = [8, 8], strides = [1, 1]} : vector<16x8xf32> to vector<8x8xf32>
    %16 = arith.subf %12, %15 : vector<8x8xf32>
    %17 = arith.mulf %16, %16 : vector<8x8xf32>
    %18 = arith.mulf %14, %14 : vector<8x8xf32>
    %19 = arith.subf %17, %18 : vector<8x8xf32>
    %cst_10 = arith.constant dense<0.000000e+00> : vector<8xf32>
    %20 = vector.multi_reduction <add>, %19, %cst_10 [0] : vector<8x8xf32> to vector<8xf32>
    %21 = vector.shape_cast %20 : vector<8xf32> to vector<1x8xf32>
    %cst_11 = arith.constant 5.000000e-01 : f32
    %22 = vector.broadcast %cst_11 : f32 to vector<1x8xf32>
    %23 = arith.mulf %22, %21 : vector<1x8xf32>
    %24 = math.exp %23 : vector<1x8xf32>
    %cst_12 = arith.constant 1.000000e-01 : f32
    %cst_13 = arith.constant 1.000000e+01 : f32
    %25 = vector.broadcast %cst_12 : f32 to vector<1x8xf32>
    %26 = arith.maximumf %25, %24 : vector<1x8xf32>
    %27 = vector.broadcast %cst_13 : f32 to vector<1x8xf32>
    %28 = arith.minimumf %27, %26 : vector<1x8xf32>
    %c0_14 = arith.constant 0 : index
    %c0_15 = arith.constant 0 : index
    %29 = vector.load %arg5[%c0_14, %c0_15] : memref<8x8xf32, #tpu.memory_space<vmem>>, vector<8x8xf32>
    %30 = vector.extract_strided_slice %29 {offsets = [0, 0], sizes = [1, 8], strides = [1, 1]} : vector<8x8xf32> to vector<1x8xf32>
    %31 = vector.extract_strided_slice %29 {offsets = [1, 0], sizes = [1, 8], strides = [1, 1]} : vector<8x8xf32> to vector<1x8xf32>
    %32 = vector.extract_strided_slice %29 {offsets = [2, 0], sizes = [1, 8], strides = [1, 1]} : vector<8x8xf32> to vector<1x8xf32>
    %33 = vector.extract_strided_slice %29 {offsets = [3, 0], sizes = [1, 8], strides = [1, 1]} : vector<8x8xf32> to vector<1x8xf32>
    %34 = vector.extract_strided_slice %29 {offsets = [4, 0], sizes = [1, 8], strides = [1, 1]} : vector<8x8xf32> to vector<1x8xf32>
    %35 = vector.extract_strided_slice %29 {offsets = [5, 0], sizes = [1, 8], strides = [1, 1]} : vector<8x8xf32> to vector<1x8xf32>
    %36 = arith.mulf %35, %28 : vector<1x8xf32>
    %37 = vector.shape_cast %36 : vector<1x8xf32> to vector<1x1x8xf32>
    %cst_16 = arith.constant dense<0.000000e+00> : vector<1xf32>
    %38 = vector.multi_reduction <add>, %37, %cst_16 [1, 2] : vector<1x1x8xf32> to vector<1xf32>
    %39 = vector.shape_cast %38 : vector<1xf32> to vector<1x1x1xf32>
    %40 = vector.extract %39[0, 0, 0] : f32 from vector<1x1x1xf32>
    %41 = vector.broadcast %5 : f32 to vector<1x8xf32>
    %42 = arith.addf %41, %30 : vector<1x8xf32>
    %cst_17 = arith.constant 0.000000e+00 : f32
    %43 = vector.broadcast %cst_17 : f32 to vector<1x8xf32>
    %44 = arith.maximumf %42, %43 : vector<1x8xf32>
    %45 = arith.mulf %32, %44 : vector<1x8xf32>
    %46 = vector.shape_cast %45 : vector<1x8xf32> to vector<1x1x8xf32>
    %cst_18 = arith.constant dense<0.000000e+00> : vector<1xf32>
    %47 = vector.multi_reduction <add>, %46, %cst_18 [1, 2] : vector<1x1x8xf32> to vector<1xf32>
    %48 = vector.shape_cast %47 : vector<1xf32> to vector<1x1x1xf32>
    %49 = vector.extract %48[0, 0, 0] : f32 from vector<1x1x1xf32>
    %50 = vector.shape_cast %32 : vector<1x8xf32> to vector<1x1x8xf32>
    %cst_19 = arith.constant dense<0.000000e+00> : vector<1xf32>
    %51 = vector.multi_reduction <add>, %50, %cst_19 [1, 2] : vector<1x1x8xf32> to vector<1xf32>
    %52 = vector.shape_cast %51 : vector<1xf32> to vector<1x1x1xf32>
    %53 = vector.extract %52[0, 0, 0] : f32 from vector<1x1x1xf32>
    %54 = vector.broadcast %5 : f32 to vector<1x8xf32>
    %55 = arith.subf %54, %30 : vector<1x8xf32>
    %cst_20 = arith.constant 0.000000e+00 : f32
    %56 = vector.broadcast %cst_20 : f32 to vector<1x8xf32>
    %57 = arith.maximumf %55, %56 : vector<1x8xf32>
    %58 = arith.mulf %33, %57 : vector<1x8xf32>
    %59 = vector.shape_cast %58 : vector<1x8xf32> to vector<1x1x8xf32>
    %cst_21 = arith.constant dense<0.000000e+00> : vector<1xf32>
    %60 = vector.multi_reduction <add>, %59, %cst_21 [1, 2] : vector<1x1x8xf32> to vector<1xf32>
    %61 = vector.shape_cast %60 : vector<1xf32> to vector<1x1x1xf32>
    %62 = vector.extract %61[0, 0, 0] : f32 from vector<1x1x1xf32>
    %63 = vector.shape_cast %33 : vector<1x8xf32> to vector<1x1x8xf32>
    %cst_22 = arith.constant dense<0.000000e+00> : vector<1xf32>
    %64 = vector.multi_reduction <add>, %63, %cst_22 [1, 2] : vector<1x1x8xf32> to vector<1xf32>
    %65 = vector.shape_cast %64 : vector<1xf32> to vector<1x1x1xf32>
    %66 = vector.extract %65[0, 0, 0] : f32 from vector<1x1x1xf32>
    %67 = vector.broadcast %5 : f32 to vector<1x8xf32>
    %68 = arith.addf %67, %31 : vector<1x8xf32>
    %69 = vector.broadcast %4 : f32 to vector<1x8xf32>
    %70 = arith.mulf %69, %30 : vector<1x8xf32>
    %71 = arith.subf %68, %70 : vector<1x8xf32>
    %cst_23 = arith.constant 0.000000e+00 : f32
    %72 = vector.broadcast %cst_23 : f32 to vector<1x8xf32>
    %73 = arith.maximumf %71, %72 : vector<1x8xf32>
    %74 = arith.mulf %34, %73 : vector<1x8xf32>
    %75 = vector.shape_cast %74 : vector<1x8xf32> to vector<1x1x8xf32>
    %cst_24 = arith.constant dense<0.000000e+00> : vector<1xf32>
    %76 = vector.multi_reduction <add>, %75, %cst_24 [1, 2] : vector<1x1x8xf32> to vector<1xf32>
    %77 = vector.shape_cast %76 : vector<1xf32> to vector<1x1x1xf32>
    %78 = vector.extract %77[0, 0, 0] : f32 from vector<1x1x1xf32>
    %79 = vector.shape_cast %34 : vector<1x8xf32> to vector<1x1x8xf32>
    %cst_25 = arith.constant dense<0.000000e+00> : vector<1xf32>
    %80 = vector.multi_reduction <add>, %79, %cst_25 [1, 2] : vector<1x1x8xf32> to vector<1xf32>
    %81 = vector.shape_cast %80 : vector<1xf32> to vector<1x1x1xf32>
    %82 = vector.extract %81[0, 0, 0] : f32 from vector<1x1x1xf32>
    %cst_26 = arith.constant 0.000000e+00 : f32
    %83 = vector.broadcast %cst_26 : f32 to vector<1x8xf32>
    %c0_i32_27 = arith.constant 0 : i32
    %84 = vector.broadcast %c0_i32_27 : i32 to vector<1x8xi32>
    %85 = arith.cmpi eq, %0, %84 : vector<1x8xi32>
    %cst_28 = arith.constant 0.000000e+00 : f32
    %86 = vector.broadcast %40 : f32 to vector<1x8xf32>
    %87 = vector.broadcast %cst_28 : f32 to vector<1x8xf32>
    %88 = arith.select %85, %86, %87 : vector<1x8xi1>, vector<1x8xf32>
    %89 = arith.addf %83, %88 : vector<1x8xf32>
    %c1_i32 = arith.constant 1 : i32
    %90 = vector.broadcast %c1_i32 : i32 to vector<1x8xi32>
    %91 = arith.cmpi eq, %0, %90 : vector<1x8xi32>
    %cst_29 = arith.constant 0.000000e+00 : f32
    %92 = vector.broadcast %49 : f32 to vector<1x8xf32>
    %93 = vector.broadcast %cst_29 : f32 to vector<1x8xf32>
    %94 = arith.select %91, %92, %93 : vector<1x8xi1>, vector<1x8xf32>
    %95 = arith.addf %89, %94 : vector<1x8xf32>
    %c2_i32 = arith.constant 2 : i32
    %96 = vector.broadcast %c2_i32 : i32 to vector<1x8xi32>
    %97 = arith.cmpi eq, %0, %96 : vector<1x8xi32>
    %cst_30 = arith.constant 0.000000e+00 : f32
    %98 = vector.broadcast %53 : f32 to vector<1x8xf32>
    %99 = vector.broadcast %cst_30 : f32 to vector<1x8xf32>
    %100 = arith.select %97, %98, %99 : vector<1x8xi1>, vector<1x8xf32>
    %101 = arith.addf %95, %100 : vector<1x8xf32>
    %c3_i32 = arith.constant 3 : i32
    %102 = vector.broadcast %c3_i32 : i32 to vector<1x8xi32>
    %103 = arith.cmpi eq, %0, %102 : vector<1x8xi32>
    %cst_31 = arith.constant 0.000000e+00 : f32
    %104 = vector.broadcast %62 : f32 to vector<1x8xf32>
    %105 = vector.broadcast %cst_31 : f32 to vector<1x8xf32>
    %106 = arith.select %103, %104, %105 : vector<1x8xi1>, vector<1x8xf32>
    %107 = arith.addf %101, %106 : vector<1x8xf32>
    %c4_i32 = arith.constant 4 : i32
    %108 = vector.broadcast %c4_i32 : i32 to vector<1x8xi32>
    %109 = arith.cmpi eq, %0, %108 : vector<1x8xi32>
    %cst_32 = arith.constant 0.000000e+00 : f32
    %110 = vector.broadcast %66 : f32 to vector<1x8xf32>
    %111 = vector.broadcast %cst_32 : f32 to vector<1x8xf32>
    %112 = arith.select %109, %110, %111 : vector<1x8xi1>, vector<1x8xf32>
    %113 = arith.addf %107, %112 : vector<1x8xf32>
    %c5_i32 = arith.constant 5 : i32
    %114 = vector.broadcast %c5_i32 : i32 to vector<1x8xi32>
    %115 = arith.cmpi eq, %0, %114 : vector<1x8xi32>
    %cst_33 = arith.constant 0.000000e+00 : f32
    %116 = vector.broadcast %78 : f32 to vector<1x8xf32>
    %117 = vector.broadcast %cst_33 : f32 to vector<1x8xf32>
    %118 = arith.select %115, %116, %117 : vector<1x8xi1>, vector<1x8xf32>
    %119 = arith.addf %113, %118 : vector<1x8xf32>
    %c6_i32 = arith.constant 6 : i32
    %120 = vector.broadcast %c6_i32 : i32 to vector<1x8xi32>
    %121 = arith.cmpi eq, %0, %120 : vector<1x8xi32>
    %cst_34 = arith.constant 0.000000e+00 : f32
    %122 = vector.broadcast %82 : f32 to vector<1x8xf32>
    %123 = vector.broadcast %cst_34 : f32 to vector<1x8xf32>
    %124 = arith.select %121, %122, %123 : vector<1x8xi1>, vector<1x8xf32>
    %125 = arith.addf %119, %124 : vector<1x8xf32>
    %c0_35 = arith.constant 0 : index
    %c0_36 = arith.constant 0 : index
    %126 = vector.load %arg8[%c0_35, %c0_36] : memref<1x8xf32, #tpu.memory_space<vmem>>, vector<1x8xf32>
    %127 = arith.addf %126, %125 : vector<1x8xf32>
    %c0_37 = arith.constant 0 : index
    %c0_38 = arith.constant 0 : index
    %128 = vector.load %arg8[%c0_37, %c0_38] : memref<1x8xf32, #tpu.memory_space<vmem>>, vector<1x8xf32>
    tpu.vector_store %arg8[%c0_37, %c0_38], %127 {strides = array<i32>} : memref<1x8xf32, #tpu.memory_space<vmem>>, vector<1x8xf32>,
    %c0_i32_39 = arith.constant 0 : i32
    %129 = arith.cmpi eq, %arg0, %c0_i32_39 : i32
    %130 = arith.extui %129 : i1 to i32
    %c0_i32_40 = arith.constant 0 : i32
    %131 = arith.cmpi ne, %130, %c0_i32_40 : i32
    scf.if %131 {
      %c0_41 = arith.constant 0 : index
      %c0_42 = arith.constant 0 : index
      %132 = memref.load %arg6[%c0_41, %c0_42] : memref<1x8xf32, #tpu.memory_space<smem>>
      %c0_43 = arith.constant 0 : index
      %c3 = arith.constant 3 : index
      %133 = memref.load %arg6[%c0_43, %c3] : memref<1x8xf32, #tpu.memory_space<smem>>
      %c0_44 = arith.constant 0 : index
      %c4 = arith.constant 4 : index
      %134 = memref.load %arg6[%c0_44, %c4] : memref<1x8xf32, #tpu.memory_space<smem>>
      %c0_45 = arith.constant 0 : index
      %c5 = arith.constant 5 : index
      %135 = memref.load %arg6[%c0_45, %c5] : memref<1x8xf32, #tpu.memory_space<smem>>
      %c0_46 = arith.constant 0 : index
      %c6 = arith.constant 6 : index
      %136 = memref.load %arg6[%c0_46, %c6] : memref<1x8xf32, #tpu.memory_space<smem>>
      %c0_47 = arith.constant 0 : index
      %c0_48 = arith.constant 0 : index
      %137 = vector.load %arg8[%c0_47, %c0_48] : memref<1x8xf32, #tpu.memory_space<vmem>>, vector<1x8xf32>
      %c0_i32_49 = arith.constant 0 : i32
      %138 = vector.broadcast %c0_i32_49 : i32 to vector<1x8xi32>
      %139 = arith.cmpi eq, %0, %138 : vector<1x8xi32>
      %cst_50 = arith.constant 0.000000e+00 : f32
      %140 = vector.broadcast %cst_50 : f32 to vector<1x8xf32>
      %141 = arith.select %139, %137, %140 : vector<1x8xi1>, vector<1x8xf32>
      %142 = vector.shape_cast %141 : vector<1x8xf32> to vector<1x1x8xf32>
      %cst_51 = arith.constant dense<0.000000e+00> : vector<1xf32>
      %143 = vector.multi_reduction <add>, %142, %cst_51 [1, 2] : vector<1x1x8xf32> to vector<1xf32>
      %144 = vector.shape_cast %143 : vector<1xf32> to vector<1x1x1xf32>
      %145 = vector.extract %144[0, 0, 0] : f32 from vector<1x1x1xf32>
      %146 = arith.mulf %145, %136 : f32
      %c1_i32_52 = arith.constant 1 : i32
      %147 = vector.broadcast %c1_i32_52 : i32 to vector<1x8xi32>
      %148 = arith.cmpi eq, %0, %147 : vector<1x8xi32>
      %cst_53 = arith.constant 0.000000e+00 : f32
      %149 = vector.broadcast %cst_53 : f32 to vector<1x8xf32>
      %150 = arith.select %148, %137, %149 : vector<1x8xi1>, vector<1x8xf32>
      %151 = vector.shape_cast %150 : vector<1x8xf32> to vector<1x1x8xf32>
      %cst_54 = arith.constant dense<0.000000e+00> : vector<1xf32>
      %152 = vector.multi_reduction <add>, %151, %cst_54 [1, 2] : vector<1x1x8xf32> to vector<1xf32>
      %153 = vector.shape_cast %152 : vector<1xf32> to vector<1x1x1xf32>
      %154 = vector.extract %153[0, 0, 0] : f32 from vector<1x1x1xf32>
      %c2_i32_55 = arith.constant 2 : i32
      %155 = vector.broadcast %c2_i32_55 : i32 to vector<1x8xi32>
      %156 = arith.cmpi eq, %0, %155 : vector<1x8xi32>
      %cst_56 = arith.constant 0.000000e+00 : f32
      %157 = vector.broadcast %cst_56 : f32 to vector<1x8xf32>
      %158 = arith.select %156, %137, %157 : vector<1x8xi1>, vector<1x8xf32>
      %159 = vector.shape_cast %158 : vector<1x8xf32> to vector<1x1x8xf32>
      %cst_57 = arith.constant dense<0.000000e+00> : vector<1xf32>
      %160 = vector.multi_reduction <add>, %159, %cst_57 [1, 2] : vector<1x1x8xf32> to vector<1xf32>
      %161 = vector.shape_cast %160 : vector<1xf32> to vector<1x1x1xf32>
      %162 = vector.extract %161[0, 0, 0] : f32 from vector<1x1x1xf32>
      %cst_58 = arith.constant 9.99999993E-9 : f32
      %163 = arith.addf %162, %cst_58 : f32
      %164 = arith.divf %154, %163 : f32
      %c3_i32_59 = arith.constant 3 : i32
      %165 = vector.broadcast %c3_i32_59 : i32 to vector<1x8xi32>
      %166 = arith.cmpi eq, %0, %165 : vector<1x8xi32>
      %cst_60 = arith.constant 0.000000e+00 : f32
      %167 = vector.broadcast %cst_60 : f32 to vector<1x8xf32>
      %168 = arith.select %166, %137, %167 : vector<1x8xi1>, vector<1x8xf32>
      %169 = vector.shape_cast %168 : vector<1x8xf32> to vector<1x1x8xf32>
      %cst_61 = arith.constant dense<0.000000e+00> : vector<1xf32>
      %170 = vector.multi_reduction <add>, %169, %cst_61 [1, 2] : vector<1x1x8xf32> to vector<1xf32>
      %171 = vector.shape_cast %170 : vector<1xf32> to vector<1x1x1xf32>
      %172 = vector.extract %171[0, 0, 0] : f32 from vector<1x1x1xf32>
      %c4_i32_62 = arith.constant 4 : i32
      %173 = vector.broadcast %c4_i32_62 : i32 to vector<1x8xi32>
      %174 = arith.cmpi eq, %0, %173 : vector<1x8xi32>
      %cst_63 = arith.constant 0.000000e+00 : f32
      %175 = vector.broadcast %cst_63 : f32 to vector<1x8xf32>
      %176 = arith.select %174, %137, %175 : vector<1x8xi1>, vector<1x8xf32>
      %177 = vector.shape_cast %176 : vector<1x8xf32> to vector<1x1x8xf32>
      %cst_64 = arith.constant dense<0.000000e+00> : vector<1xf32>
      %178 = vector.multi_reduction <add>, %177, %cst_64 [1, 2] : vector<1x1x8xf32> to vector<1xf32>
      %179 = vector.shape_cast %178 : vector<1xf32> to vector<1x1x1xf32>
      %180 = vector.extract %179[0, 0, 0] : f32 from vector<1x1x1xf32>
      %cst_65 = arith.constant 9.99999993E-9 : f32
      %181 = arith.addf %180, %cst_65 : f32
      %182 = arith.divf %172, %181 : f32
      %c5_i32_66 = arith.constant 5 : i32
      %183 = vector.broadcast %c5_i32_66 : i32 to vector<1x8xi32>
      %184 = arith.cmpi eq, %0, %183 : vector<1x8xi32>
      %cst_67 = arith.constant 0.000000e+00 : f32
      %185 = vector.broadcast %cst_67 : f32 to vector<1x8xf32>
      %186 = arith.select %184, %137, %185 : vector<1x8xi1>, vector<1x8xf32>
      %187 = vector.shape_cast %186 : vector<1x8xf32> to vector<1x1x8xf32>
      %cst_68 = arith.constant dense<0.000000e+00> : vector<1xf32>
      %188 = vector.multi_reduction <add>, %187, %cst_68 [1, 2] : vector<1x1x8xf32> to vector<1xf32>
      %189 = vector.shape_cast %188 : vector<1xf32> to vector<1x1x1xf32>
      %190 = vector.extract %189[0, 0, 0] : f32 from vector<1x1x1xf32>
      %c6_i32_69 = arith.constant 6 : i32
      %191 = vector.broadcast %c6_i32_69 : i32 to vector<1x8xi32>
      %192 = arith.cmpi eq, %0, %191 : vector<1x8xi32>
      %cst_70 = arith.constant 0.000000e+00 : f32
      %193 = vector.broadcast %cst_70 : f32 to vector<1x8xf32>
      %194 = arith.select %192, %137, %193 : vector<1x8xi1>, vector<1x8xf32>
      %195 = vector.shape_cast %194 : vector<1x8xf32> to vector<1x1x8xf32>
      %cst_71 = arith.constant dense<0.000000e+00> : vector<1xf32>
      %196 = vector.multi_reduction <add>, %195, %cst_71 [1, 2] : vector<1x1x8xf32> to vector<1xf32>
      %197 = vector.shape_cast %196 : vector<1xf32> to vector<1x1x1xf32>
      %198 = vector.extract %197[0, 0, 0] : f32 from vector<1x1x1xf32>
      %cst_72 = arith.constant 9.99999993E-9 : f32
      %199 = arith.addf %198, %cst_72 : f32
      %200 = arith.divf %190, %199 : f32
      %201 = arith.addf %164, %182 : f32
      %202 = arith.mulf %132, %200 : f32
      %203 = arith.addf %201, %202 : f32
      %204 = arith.mulf %146, %200 : f32
      %205 = arith.mulf %134, %204 : f32
      %206 = arith.addf %133, %205 : f32
      %207 = arith.mulf %135, %206 : f32
      %208 = arith.addf %134, %207 : f32
      %cst_73 = arith.constant 0.000000e+00 : f32
      %209 = arith.maximumf %208, %cst_73 : f32
      %cst_74 = arith.constant 0.000000e+00 : f32
      %210 = vector.broadcast %cst_74 : f32 to vector<1x8xf32>
      %c0_i32_75 = arith.constant 0 : i32
      %211 = vector.broadcast %c0_i32_75 : i32 to vector<1x8xi32>
      %212 = arith.cmpi eq, %0, %211 : vector<1x8xi32>
      %cst_76 = arith.constant 0.000000e+00 : f32
      %213 = vector.broadcast %206 : f32 to vector<1x8xf32>
      %214 = vector.broadcast %cst_76 : f32 to vector<1x8xf32>
      %215 = arith.select %212, %213, %214 : vector<1x8xi1>, vector<1x8xf32>
      %216 = arith.addf %210, %215 : vector<1x8xf32>
      %c1_i32_77 = arith.constant 1 : i32
      %217 = vector.broadcast %c1_i32_77 : i32 to vector<1x8xi32>
      %218 = arith.cmpi eq, %0, %217 : vector<1x8xi32>
      %cst_78 = arith.constant 0.000000e+00 : f32
      %219 = vector.broadcast %203 : f32 to vector<1x8xf32>
      %220 = vector.broadcast %cst_78 : f32 to vector<1x8xf32>
      %221 = arith.select %218, %219, %220 : vector<1x8xi1>, vector<1x8xf32>
      %222 = arith.addf %216, %221 : vector<1x8xf32>
      %c2_i32_79 = arith.constant 2 : i32
      %223 = vector.broadcast %c2_i32_79 : i32 to vector<1x8xi32>
      %224 = arith.cmpi eq, %0, %223 : vector<1x8xi32>
      %cst_80 = arith.constant 0.000000e+00 : f32
      %225 = vector.broadcast %164 : f32 to vector<1x8xf32>
      %226 = vector.broadcast %cst_80 : f32 to vector<1x8xf32>
      %227 = arith.select %224, %225, %226 : vector<1x8xi1>, vector<1x8xf32>
      %228 = arith.addf %222, %227 : vector<1x8xf32>
      %c3_i32_81 = arith.constant 3 : i32
      %229 = vector.broadcast %c3_i32_81 : i32 to vector<1x8xi32>
      %230 = arith.cmpi eq, %0, %229 : vector<1x8xi32>
      %cst_82 = arith.constant 0.000000e+00 : f32
      %231 = vector.broadcast %182 : f32 to vector<1x8xf32>
      %232 = vector.broadcast %cst_82 : f32 to vector<1x8xf32>
      %233 = arith.select %230, %231, %232 : vector<1x8xi1>, vector<1x8xf32>
      %234 = arith.addf %228, %233 : vector<1x8xf32>
      %c4_i32_83 = arith.constant 4 : i32
      %235 = vector.broadcast %c4_i32_83 : i32 to vector<1x8xi32>
      %236 = arith.cmpi eq, %0, %235 : vector<1x8xi32>
      %cst_84 = arith.constant 0.000000e+00 : f32
      %237 = vector.broadcast %200 : f32 to vector<1x8xf32>
      %238 = vector.broadcast %cst_84 : f32 to vector<1x8xf32>
      %239 = arith.select %236, %237, %238 : vector<1x8xi1>, vector<1x8xf32>
      %240 = arith.addf %234, %239 : vector<1x8xf32>
      %c5_i32_85 = arith.constant 5 : i32
      %241 = vector.broadcast %c5_i32_85 : i32 to vector<1x8xi32>
      %242 = arith.cmpi eq, %0, %241 : vector<1x8xi32>
      %cst_86 = arith.constant 0.000000e+00 : f32
      %243 = vector.broadcast %204 : f32 to vector<1x8xf32>
      %244 = vector.broadcast %cst_86 : f32 to vector<1x8xf32>
      %245 = arith.select %242, %243, %244 : vector<1x8xi1>, vector<1x8xf32>
      %246 = arith.addf %240, %245 : vector<1x8xf32>
      %c6_i32_87 = arith.constant 6 : i32
      %247 = vector.broadcast %c6_i32_87 : i32 to vector<1x8xi32>
      %248 = arith.cmpi eq, %0, %247 : vector<1x8xi32>
      %cst_88 = arith.constant 0.000000e+00 : f32
      %249 = vector.broadcast %146 : f32 to vector<1x8xf32>
      %250 = vector.broadcast %cst_88 : f32 to vector<1x8xf32>
      %251 = arith.select %248, %249, %250 : vector<1x8xi1>, vector<1x8xf32>
      %252 = arith.addf %246, %251 : vector<1x8xf32>
      %c7_i32 = arith.constant 7 : i32
      %253 = vector.broadcast %c7_i32 : i32 to vector<1x8xi32>
      %254 = arith.cmpi eq, %0, %253 : vector<1x8xi32>
      %cst_89 = arith.constant 0.000000e+00 : f32
      %255 = vector.broadcast %209 : f32 to vector<1x8xf32>
      %256 = vector.broadcast %cst_89 : f32 to vector<1x8xf32>
      %257 = arith.select %254, %255, %256 : vector<1x8xi1>, vector<1x8xf32>
      %258 = arith.addf %252, %257 : vector<1x8xf32>
      %c0_90 = arith.constant 0 : index
      %c0_91 = arith.constant 0 : index
      %259 = vector.load %arg7[%c0_90, %c0_91] : memref<1x8xf32, #tpu.memory_space<vmem>>, vector<1x8xf32>
      tpu.vector_store %arg7[%c0_90, %c0_91], %258 {strides = array<i32>} : memref<1x8xf32, #tpu.memory_space<vmem>>, vector<1x8xf32>,
    } else {
    }
    return
  }
  func.func @transform_0(%arg0: i32) -> (i32, i32) {
    %c0_i32 = arith.constant 0 : i32
    %c0_i32_0 = arith.constant 0 : i32
    return %c0_i32, %arg0 : i32, i32
  }
  func.func @transform_1(%arg0: i32) -> (i32, i32) {
    %c0_i32 = arith.constant 0 : i32
    %c0_i32_0 = arith.constant 0 : i32
    return %c0_i32, %arg0 : i32, i32
  }
  func.func @transform_2(%arg0: i32) -> (i32, i32) {
    %c0_i32 = arith.constant 0 : i32
    %c0_i32_0 = arith.constant 0 : i32
    %c0_i32_1 = arith.constant 0 : i32
    return %c0_i32, %c0_i32_0 : i32, i32
  }
  func.func @transform_3(%arg0: i32) -> (i32, i32) {
    %c0_i32 = arith.constant 0 : i32
    %c0_i32_0 = arith.constant 0 : i32
    %c0_i32_1 = arith.constant 0 : i32
    return %c0_i32, %c0_i32_0 : i32, i32
  }
  func.func @transform_4(%arg0: i32) -> (i32, i32) {
    %c0_i32 = arith.constant 0 : i32
    %c0_i32_0 = arith.constant 0 : i32
    return %c0_i32, %arg0 : i32, i32
  }
  func.func @transform_5(%arg0: i32) -> (i32, i32) {
    %c0_i32 = arith.constant 0 : i32
    %c0_i32_0 = arith.constant 0 : i32
    %c0_i32_1 = arith.constant 0 : i32
    return %c0_i32, %c0_i32_0 : i32, i32
  }
  func.func @transform_6(%arg0: i32) -> (i32, i32) {
    %c0_i32 = arith.constant 0 : i32
    %c0_i32_0 = arith.constant 0 : i32
    %c0_i32_1 = arith.constant 0 : i32
    return %c0_i32, %c0_i32_0 : i32, i32
  }
}

</mosaic_0001>

<llo_original>
// kernel: tpu_custom_call.1
$region0: #{tpu_custom_call.1}
  #allocation0 [shape = 'u32[]', space=smem, size = 0x4, offset = 0x4, fixed_abs, tag = 'smem constant byte address 0x4 - core index']
  #allocation1 [shape = 'u32[144,128]{1,0:T(1,128)}', space=vmem, size = 0x12000, scoped, tag = 'internal scratch']
  #allocation2 [shape = 'f32[1,8]{1,0:T(1,128)}', space=vmem, size = 0x200, scoped, tag = 'scratch operand']
  %s0 = inlined_call_operand.vmem [shape: f32[32,8], index: 0, kind: input, shape index: {}]
  %s1 = inlined_call_operand.vmem [shape: f32[8,8], index: 1, kind: input, shape index: {}]
  %s2 = inlined_call_operand.vmem [shape: f32[16,32], index: 2, kind: input, shape index: {}]
  %s3 = inlined_call_operand.vmem [shape: f32[16,1], index: 3, kind: input, shape index: {}]
  %s4 = inlined_call_operand.vmem [shape: f32[8,8], index: 4, kind: input, shape index: {}]
  %s5 = inlined_call_operand.vmem [shape: f32[1,8], index: 5, kind: input, shape index: {}]
  %s6 = inlined_call_operand.hbm [shape: f32[1,8], index: 6, kind: output, shape index: {}]
  %s7 = sld [smem:[#allocation0]]
  $region46: #{tpu_custom_call.1} parent=0
    _
  %s9 = ssub.s32 1, %s7
  %s10 = scalar_select 0, %s9, %s7
  $region1: #{tpu_custom_call.1} parent=0
    #allocation3 [shape = 'u8[512]{0}', space=smem, size = 0x200, scoped, tag = 'input window, operand 5, single buffered']
    #allocation4 [shape = 's32[1]{0}', space=sflag, size = 0x4, scoped, tag = 'scoped memory for tpu_custom_call.1']
    #allocation5 [shape = 's32[1]{0}', space=sflag, size = 0x4, scoped, tag = 'scoped memory for tpu_custom_call.1']
    #allocation6 [shape = 'u8[512]{0}', space=vmem, size = 0x400, scoped, tag = 'output window, operand 0, single buffered']
    %11 = vsyncpa [#allocation5], 0
    %12 = vsyncpa [#allocation4], 0
    // Predicated region
    $region2: #{tpu_custom_call.1} parent=1 // pred_check
      _
    $region3: #{tpu_custom_call.1} parent=1 // pred_check_branch
      %14 = sbr.rel (0) target = $region5
    $region4: #{tpu_custom_call.1} parent=1 // pred_region
      _
    $region5: #{tpu_custom_call.1} parent=1 // pred_fallthru
      _
    // Predicated region
    $region6: #{tpu_custom_call.1} parent=1 // pred_check
      _
    $region7: #{tpu_custom_call.1} parent=1 // pred_check_branch
      %16 = sbr.rel (0) target = $region9
    $region8: #{tpu_custom_call.1} parent=1 // pred_region
      _
    $region9: #{tpu_custom_call.1} parent=1 // pred_fallthru
      _
    // Predicated region
    $region10: #{tpu_custom_call.1} parent=1 // pred_check
      _
    $region11: #{tpu_custom_call.1} parent=1 // pred_check_branch
      %18 = sbr.rel (0) target = $region13
    $region12: #{tpu_custom_call.1} parent=1 // pred_region
      _
    $region13: #{tpu_custom_call.1} parent=1 // pred_fallthru
      _
    // Predicated region
    $region14: #{tpu_custom_call.1} parent=1 // pred_check
      _
    $region15: #{tpu_custom_call.1} parent=1 // pred_check_branch
      %20 = sbr.rel (0) target = $region17
    $region16: #{tpu_custom_call.1} parent=1 // pred_region
      _
    $region17: #{tpu_custom_call.1} parent=1 // pred_fallthru
      _
    // Predicated region
    $region18: #{tpu_custom_call.1} parent=1 // pred_check
      _
    $region19: #{tpu_custom_call.1} parent=1 // pred_check_branch
      %22 = sbr.rel (0) target = $region21
    $region20: #{tpu_custom_call.1} parent=1 // pred_region
      _
    $region21: #{tpu_custom_call.1} parent=1 // pred_fallthru
      _
    // Predicated region
    $region22: #{tpu_custom_call.1} parent=1 // pred_check
      _
    $region23: #{tpu_custom_call.1} parent=1 // pred_check_branch
      %24 = sbr.rel (0) target = $region25
    $region24: #{tpu_custom_call.1} parent=1 // pred_region
      %s26 = ssub.s32 16, 16
      %27 = vsyncadd [#allocation5], %s26
      %s29 = sshll.u32 %s5, 4
      %s30 = int_to_ptr.vmem [resolvable:$true] %s29
      %32 = dma.vmem_to_smem %s30, 16, [#allocation3], [#allocation5]
    $region25: #{tpu_custom_call.1} parent=1 // pred_fallthru
      _
    // Predicated region
    $region26: #{tpu_custom_call.1} parent=1 // pred_check
      _
    $region27: #{tpu_custom_call.1} parent=1 // pred_check_branch
      %34 = sbr.rel (0) target = $region29
    $region28: #{tpu_custom_call.1} parent=1 // pred_region
      %35 = dma.done [#allocation5], 16
    $region29: #{tpu_custom_call.1} parent=1 // pred_fallthru
      _
    %36 = sfence
    %v37 = vlaneseq
    %v38 = vand.u32 %v37, 127
    %p39 = scmp.eq.s32.totalorder 0, 0
    // Predicated region
    $region30: #{tpu_custom_call.1} parent=1 // pred_check
      %p40 = pneg %p39
    $region31: #{tpu_custom_call.1} parent=1 // pred_check_branch
      %42 = sbr.rel (%p40) target = $region33
    $region32: #{tpu_custom_call.1} parent=1 // pred_region
      %vm43 = vcmask 57344
      %44 = vst.msk [vmem:[#allocation2] sm:$0x1] %vm43, 0.0
    $region33: #{tpu_custom_call.1} parent=1 // pred_fallthru
      _
    %s45 = sld [smem:[#allocation3 + $0x1]]
    %s46 = sld [smem:[#allocation3 + $0x2]]
    %v47 = vld [vmem:[%s0] sm:$0xff]
    %v48 = vld [vmem:[%s0 + $0x8] sm:$0xff]
    %v49 = vld [vmem:[%s0 + $0x10] sm:$0xff]
    %v50 = vld [vmem:[%s0 + $0x18] sm:$0xff]
    %v51 = vld [vmem:[%s2] sm:$0xff]
    %v52 = vld [vmem:[%s2 + $0x8] sm:$0xff]
    %v53 = vld [vmem:[%s3] sm:$0xff]
    %v54 = vld [vmem:[%s3 + $0x8] sm:$0xff]
    %56 = vset.pattern.permute.xlu0 0
    %57 = vperm.xlu0 %56, %v53
    %v58 = vpop.permute.xlu0 %57
    %61 = vset.pattern.permute.xlu0 0
    %62 = vperm.xlu0 %61, %v54
    %v63 = vpop.permute.xlu0 %62
    %vm65 = vcmask 261120
    %v67 = vsel %vm65, %v51, 0
    %v70 = vsel %vm65, %v52, 0
    %72 = vmatprep.subr.mxu0 0.0
    %73 = vmatpush1.msra.mxu0 %v47
    %74 = vmatprep.subr.mxu0 0.0
    %75 = vmatpush1.msra.mxu0 %v48
    %76 = vmatprep.subr.mxu0 0.0
    %77 = vmatpush1.msra.mxu0 %v49
    %78 = vmatprep.subr.mxu0 0.0
    %79 = vmatpush1.msra.mxu0 %v50
    %80 = vmatprep.subr.mxu0 0.0
    %81 = vmatpush1.msra.mxu0 0.0
    %82 = vmatprep.subr.mxu0 0.0
    %83 = vmatpush1.msra.mxu0 0.0
    %84 = vmatprep.subr.mxu0 0.0
    %85 = vmatpush1.msra.mxu0 0.0
    %86 = vmatprep.subr.mxu0 0.0
    %87 = vmatpush1.msra.mxu0 0.0
    %88 = vmatprep.subr.mxu0 0.0
    %89 = vmatpush1.msra.mxu0 0.0
    %90 = vmatprep.subr.mxu0 0.0
    %91 = vmatpush1.msra.mxu0 0.0
    %92 = vmatprep.subr.mxu0 0.0
    %93 = vmatpush1.msra.mxu0 0.0
    %94 = vmatprep.subr.mxu0 0.0
    %95 = vmatpush1.msra.mxu0 0.0
    %96 = vmatprep.subr.mxu0 0.0
    %97 = vmatpush1.msra.mxu0 0.0
    %98 = vmatprep.subr.mxu0 0.0
    %99 = vmatpush1.msra.mxu0 0.0
    %100 = vmatprep.subr.mxu0 0.0
    %101 = vmatpush1.msra.mxu0 0.0
    %102 = vmatprep.subr.mxu0 0.0
    %103 = vmatpush1.msra.mxu0 0.0
    %104 = vmatprep.subr.mxu0 0.0
    %105 = vmatpush1.msra.mxu0 0.0
    %106 = vmatprep.subr.mxu0 0.0
    %107 = vmatpush1.msra.mxu0 0.0
    %108 = vmatprep.subr.mxu0 0.0
    %109 = vmatpush1.msra.mxu0 0.0
    %110 = vmatprep.subr.mxu0 0.0
    %111 = vmatpush1.msra.mxu0 0.0
    %112 = vmatprep.subr.mxu0 0.0
    %113 = vmatpush1.msra.mxu0 0.0
    %114 = vmatprep.subr.mxu0 0.0
    %115 = vmatpush1.msra.mxu0 0.0
    %116 = vmatprep.subr.mxu0 0.0
    %117 = vmatpush1.msra.mxu0 0.0
    %118 = vmatprep.subr.mxu0 0.0
    %119 = vmatpush1.msra.mxu0 0.0
    %120 = vmatprep.subr.mxu0 0.0
    %121 = vmatpush1.msra.mxu0 0.0
    %122 = vmatprep.subr.mxu0 0.0
    %123 = vmatpush1.msra.mxu0 0.0
    %124 = vmatprep.subr.mxu0 0.0
    %125 = vmatpush1.msra.mxu0 0.0
    %126 = vmatprep.subr.mxu0 0.0
    %127 = vmatpush1.msra.mxu0 0.0
    %128 = vmatprep.subr.mxu0 0.0
    %129 = vmatpush1.msra.mxu0 0.0
    %130 = vmatprep.subr.mxu0 0.0
    %131 = vmatpush1.msra.mxu0 0.0
    %132 = vmatprep.subr.mxu0 0.0
    %133 = vmatpush1.msra.mxu0 0.0
    %134 = vmatprep.subr.mxu0 0.0
    %135 = vmatpush1.msra.mxu0 0.0
    %136 = vmatprep.mubr.f32.mxu0 0.0
    %137 = vmatmul.mubr.f32.gmra.mrb[0].mxu0 %v67
    %v138 = vpop.f32.mrb[0].mxu0
    %v139 = vadd.f32 %v58, %v138
    %v140 = vpop.f32.mrb[0].mxu0
    %141 = vmatprep.mubr.f32.mxu0 0.0
    %142 = vmatmul.mubr.f32.gmra.mrb[0].mxu0 %v70
    %v143 = vpop.f32.mrb[0].mxu0
    %v144 = vadd.f32 %v63, %v143
    %v145 = vpop.f32.mrb[0].mxu0
    %146 = vdwg.mxu0
    %v147 = vld [vmem:[%s1] sm:$0xff]
    %v148 = vsub.f32 %v147, %v139
    %v149 = vsub.f32 %v147, %v144
    %v150 = vmul.f32 %v149, %v149
    %v151 = vmul.f32 %v148, %v148
    %v152 = vsub.f32 %v150, %v151
    %vm153 = vcmask 64512
    %v154 = vsel %vm153, %v152, 0.0
    %v155 = vrot.slane %v154, 4
    %v156 = vadd.f32 %v154, %v155
    %v157 = vrot.slane %v156, 2
    %v158 = vadd.f32 %v156, %v157
    %v159 = vrot.slane %v158, 1
    %v160 = vadd.f32 %v158, %v159
    %v161 = vmul.f32 %v160, 0.5
    %v162 = vmul.f32 %v161, 1.442695
    %v163 = vpow.pop %v162
    %v164 = vmax.f32 %v163, 0.1
    %v165 = vmin.f32 %v164, 10.0
    %v166 = vld [vmem:[%s4] sm:$0xff]
    %v167 = vmul.f32 %v166, %v165
    %v169 = vrot.slane %v167, 5
    %vm171 = vcmask 57344
    %v172 = vsel %vm171, %v169, 0.0
    %173 = vadd.xlane.f32.xlu0 %v172
    %v174 = vpop.xlane.xlu0 %173
    %v175 = vrot.slane %v174, 4
    %v176 = vadd.f32 %v174, %v175
    %v177 = vrot.slane %v176, 2
    %v178 = vadd.f32 %v176, %v177
    %v179 = vrot.slane %v178, 1
    %v180 = vadd.f32 %v178, %v179
    %s181 = vtos %v180
    %v182 = vstv %s46
    %v183 = vadd.f32 %v182, %v166
    %v184 = vmax.f32 %v183, 0.0
    %v186 = vrot.slane %v184, 6
    %v188 = vmul.f32 %v166, %v186
    %v190 = vrot.slane %v188, 2
    %v192 = vsel %vm171, %v190, 0.0
    %193 = vadd.xlane.f32.xlu0 %v192
    %v194 = vpop.xlane.xlu0 %193
    %v195 = vrot.slane %v194, 4
    %v196 = vadd.f32 %v194, %v195
    %v197 = vrot.slane %v196, 2
    %v198 = vadd.f32 %v196, %v197
    %v199 = vrot.slane %v198, 1
    %v200 = vadd.f32 %v198, %v199
    %s201 = vtos %v200
    %v203 = vrot.slane %v166, 2
    %v205 = vsel %vm171, %v203, 0.0
    %206 = vadd.xlane.f32.xlu0 %v205
    %v207 = vpop.xlane.xlu0 %206
    %v208 = vrot.slane %v207, 4
    %v209 = vadd.f32 %v207, %v208
    %v210 = vrot.slane %v209, 2
    %v211 = vadd.f32 %v209, %v210
    %v212 = vrot.slane %v211, 1
    %v213 = vadd.f32 %v211, %v212
    %s214 = vtos %v213
    %v215 = vsub.f32 %v182, %v166
    %v216 = vmax.f32 %v215, 0.0
    %v218 = vrot.slane %v216, 5
    %v220 = vmul.f32 %v166, %v218
    %v222 = vrot.slane %v220, 3
    %v224 = vsel %vm171, %v222, 0.0
    %225 = vadd.xlane.f32.xlu0 %v224
    %v226 = vpop.xlane.xlu0 %225
    %v227 = vrot.slane %v226, 4
    %v228 = vadd.f32 %v226, %v227
    %v229 = vrot.slane %v228, 2
    %v230 = vadd.f32 %v228, %v229
    %v231 = vrot.slane %v230, 1
    %v232 = vadd.f32 %v230, %v231
    %s233 = vtos %v232
    %v234 = vrot.slane %v166, 3
    %v236 = vsel %vm171, %v234, 0.0
    %237 = vadd.xlane.f32.xlu0 %v236
    %v238 = vpop.xlane.xlu0 %237
    %v239 = vrot.slane %v238, 4
    %v240 = vadd.f32 %v238, %v239
    %v241 = vrot.slane %v240, 2
    %v242 = vadd.f32 %v240, %v241
    %v243 = vrot.slane %v242, 1
    %v244 = vadd.f32 %v242, %v243
    %s245 = vtos %v244
    %v246 = vstv %s45
    %v247 = vmul.f32 %v246, %v166
    %v249 = vrot.slane %v247, 7
    %v251 = vsub.f32 %v183, %v249
    %v252 = vmax.f32 %v251, 0.0
    %v254 = vrot.slane %v252, 5
    %v256 = vmul.f32 %v166, %v254
    %v258 = vrot.slane %v256, 4
    %v260 = vsel %vm171, %v258, 0.0
    %261 = vadd.xlane.f32.xlu0 %v260
    %v262 = vpop.xlane.xlu0 %261
    %v263 = vrot.slane %v262, 4
    %v264 = vadd.f32 %v262, %v263
    %v265 = vrot.slane %v264, 2
    %v266 = vadd.f32 %v264, %v265
    %v267 = vrot.slane %v266, 1
    %v268 = vadd.f32 %v266, %v267
    %s269 = vtos %v268
    %v270 = vrot.slane %v166, 4
    %v272 = vsel %vm171, %v270, 0.0
    %273 = vadd.xlane.f32.xlu0 %v272
    %v274 = vpop.xlane.xlu0 %273
    %v275 = vrot.slane %v274, 4
    %v276 = vadd.f32 %v274, %v275
    %v277 = vrot.slane %v276, 2
    %v278 = vadd.f32 %v276, %v277
    %v279 = vrot.slane %v278, 1
    %v280 = vadd.f32 %v278, %v279
    %s281 = vtos %v280
    %vm282 = vcmp.eq.s32.totalorder %v38, 0
    %v283 = vstv %s181
    %v284 = vsel %vm282, %v283, 0.0
    %v285 = vadd.f32 %v284, 0.0
    %vm286 = vcmp.eq.s32.totalorder %v38, 1
    %v287 = vstv %s201
    %v288 = vsel %vm286, %v287, 0.0
    %v289 = vadd.f32 %v285, %v288
    %vm290 = vcmp.eq.s32.totalorder %v38, 2
    %v291 = vstv %s214
    %v292 = vsel %vm290, %v291, 0.0
    %v293 = vadd.f32 %v289, %v292
    %vm294 = vcmp.eq.s32.totalorder %v38, 3
    %v295 = vstv %s233
    %v296 = vsel %vm294, %v295, 0.0
    %v297 = vadd.f32 %v293, %v296
    %vm298 = vcmp.eq.s32.totalorder %v38, 4
    %v299 = vstv %s245
    %v300 = vsel %vm298, %v299, 0.0
    %v301 = vadd.f32 %v297, %v300
    %vm302 = vcmp.eq.s32.totalorder %v38, 5
    %v303 = vstv %s269
    %v304 = vsel %vm302, %v303, 0.0
    %v305 = vadd.f32 %v301, %v304
    %vm306 = vcmp.eq.s32.totalorder %v38, 6
    %v307 = vstv %s281
    %v308 = vsel %vm306, %v307, 0.0
    %v309 = vadd.f32 %v305, %v308
    %v310 = vld [vmem:[#allocation2] sm:$0x1]
    %v311 = vadd.f32 %v310, %v309
    %312 = vst.msk [vmem:[#allocation2] sm:$0x1] %vm171, %v311
    // Predicated region
    $region34: #{tpu_custom_call.1} parent=1 // pred_check
      %p313 = pneg %p39
    $region35: #{tpu_custom_call.1} parent=1 // pred_check_branch
      %315 = sbr.rel (%p313) target = $region37
    $region36: #{tpu_custom_call.1} parent=1 // pred_region
      %s316 = sld [smem:[#allocation3]]
      %s317 = sld [smem:[#allocation3 + $0x3]]
      %s318 = sld [smem:[#allocation3 + $0x4]]
      %s319 = sld [smem:[#allocation3 + $0x5]]
      %s320 = sld [smem:[#allocation3 + $0x6]]
      %v321 = vld [vmem:[#allocation2] sm:$0x1]
      %v322 = vsel %vm282, %v321, 0.0
      %v323 = vsel %vm171, %v322, 0.0
      %324 = vadd.xlane.f32.xlu0 %v323
      %v325 = vpop.xlane.xlu0 %324
      %v326 = vrot.slane %v325, 4
      %v327 = vadd.f32 %v325, %v326
      %v328 = vrot.slane %v327, 2
      %v329 = vadd.f32 %v327, %v328
      %v330 = vrot.slane %v329, 1
      %v331 = vadd.f32 %v329, %v330
      %s332 = vtos %v331
      %s333 = smul.f32 %s332, %s320
      %v334 = vsel %vm286, %v321, 0.0
      %v335 = vsel %vm171, %v334, 0.0
      %336 = vadd.xlane.f32.xlu0 %v335
      %v337 = vpop.xlane.xlu0 %336
      %v338 = vrot.slane %v337, 4
      %v339 = vadd.f32 %v337, %v338
      %v340 = vrot.slane %v339, 2
      %v341 = vadd.f32 %v339, %v340
      %v342 = vrot.slane %v341, 1
      %v343 = vadd.f32 %v341, %v342
      %s344 = vtos %v343
      %v345 = vsel %vm290, %v321, 0.0
      %v346 = vsel %vm171, %v345, 0.0
      %347 = vadd.xlane.f32.xlu0 %v346
      %v348 = vpop.xlane.xlu0 %347
      %v349 = vrot.slane %v348, 4
      %v350 = vadd.f32 %v348, %v349
      %v351 = vrot.slane %v350, 2
      %v352 = vadd.f32 %v350, %v351
      %v353 = vrot.slane %v352, 1
      %v354 = vadd.f32 %v352, %v353
      %s355 = vtos %v354
      %s356 = sadd.f32 %s355, 1e-08
      %v357 = vstv %s356
      %v358 = vrcp.pop %v357
      %s359 = vtos %v358
      %s360 = smul.f32 %s344, %s359
      %v361 = vsel %vm294, %v321, 0.0
      %v362 = vsel %vm171, %v361, 0.0
      %363 = vadd.xlane.f32.xlu0 %v362
      %v364 = vpop.xlane.xlu0 %363
      %v365 = vrot.slane %v364, 4
      %v366 = vadd.f32 %v364, %v365
      %v367 = vrot.slane %v366, 2
      %v368 = vadd.f32 %v366, %v367
      %v369 = vrot.slane %v368, 1
      %v370 = vadd.f32 %v368, %v369
      %s371 = vtos %v370
      %v372 = vsel %vm298, %v321, 0.0
      %v373 = vsel %vm171, %v372, 0.0
      %374 = vadd.xlane.f32.xlu0 %v373
      %v375 = vpop.xlane.xlu0 %374
      %v376 = vrot.slane %v375, 4
      %v377 = vadd.f32 %v375, %v376
      %v378 = vrot.slane %v377, 2
      %v379 = vadd.f32 %v377, %v378
      %v380 = vrot.slane %v379, 1
      %v381 = vadd.f32 %v379, %v380
      %s382 = vtos %v381
      %s383 = sadd.f32 %s382, 1e-08
      %v384 = vstv %s383
      %v385 = vrcp.pop %v384
      %s386 = vtos %v385
      %s387 = smul.f32 %s371, %s386
      %v388 = vsel %vm302, %v321, 0.0
      %v389 = vsel %vm171, %v388, 0.0
      %390 = vadd.xlane.f32.xlu0 %v389
      %v391 = vpop.xlane.xlu0 %390
      %v392 = vrot.slane %v391, 4
      %v393 = vadd.f32 %v391, %v392
      %v394 = vrot.slane %v393, 2
      %v395 = vadd.f32 %v393, %v394
      %v396 = vrot.slane %v395, 1
      %v397 = vadd.f32 %v395, %v396
      %s398 = vtos %v397
      %v399 = vsel %vm306, %v321, 0.0
      %v400 = vsel %vm171, %v399, 0.0
      %401 = vadd.xlane.f32.xlu0 %v400
      %v402 = vpop.xlane.xlu0 %401
      %v403 = vrot.slane %v402, 4
      %v404 = vadd.f32 %v402, %v403
      %v405 = vrot.slane %v404, 2
      %v406 = vadd.f32 %v404, %v405
      %v407 = vrot.slane %v406, 1
      %v408 = vadd.f32 %v406, %v407
      %s409 = vtos %v408
      %s410 = sadd.f32 %s409, 1e-08
      %v411 = vstv %s410
      %v412 = vrcp.pop %v411
      %s413 = vtos %v412
      %s414 = smul.f32 %s398, %s413
      %s415 = sadd.f32 %s360, %s387
      %s416 = smul.f32 %s316, %s414
      %s417 = sadd.f32 %s415, %s416
      %s418 = smul.f32 %s333, %s414
      %s419 = smul.f32 %s318, %s418
      %s420 = sadd.f32 %s317, %s419
      %s421 = smul.f32 %s319, %s420
      %s422 = sadd.f32 %s318, %s421
      %s423 = smax.f32 %s422, 0.0
      %v424 = vstv %s420
      %v425 = vsel %vm282, %v424, 0.0
      %v426 = vadd.f32 %v425, 0.0
      %v427 = vstv %s417
      %v428 = vsel %vm286, %v427, 0.0
      %v429 = vadd.f32 %v426, %v428
      %v430 = vstv %s360
      %v431 = vsel %vm290, %v430, 0.0
      %v432 = vadd.f32 %v429, %v431
      %v433 = vstv %s387
      %v434 = vsel %vm294, %v433, 0.0
      %v435 = vadd.f32 %v432, %v434
      %v436 = vstv %s414
      %v437 = vsel %vm298, %v436, 0.0
      %v438 = vadd.f32 %v435, %v437
      %v439 = vstv %s418
      %v440 = vsel %vm302, %v439, 0.0
      %v441 = vadd.f32 %v438, %v440
      %v442 = vstv %s333
      %v443 = vsel %vm306, %v442, 0.0
      %v444 = vadd.f32 %v441, %v443
      %vm445 = vcmp.eq.s32.totalorder %v38, 7
      %v446 = vstv %s423
      %v447 = vsel %vm445, %v446, 0.0
      %v448 = vadd.f32 %v444, %v447
      %449 = vst.msk [vmem:[#allocation6] sm:$0x1] %vm171, %v448
    $region37: #{tpu_custom_call.1} parent=1 // pred_fallthru
      _
    // Predicated region
    $region38: #{tpu_custom_call.1} parent=1 // pred_check
      _
    $region39: #{tpu_custom_call.1} parent=1 // pred_check_branch
      %451 = sbr.rel (0) target = $region41
    $region40: #{tpu_custom_call.1} parent=1 // pred_region
      %s453 = ssub.s32 16, 16
      %454 = vsyncadd [#allocation4], %s453
      %s456 = sshll.u32 [#allocation6], 4
      %s457 = int_to_ptr.vmem [resolvable:$true] %s456
      %459 = dma.vmem_to_hbm [thread:$0]  %s457, 16, %s6, [#allocation4]
    $region41: #{tpu_custom_call.1} parent=1 // pred_fallthru
      _
    // Predicated region
    $region42: #{tpu_custom_call.1} parent=1 // pred_check
      _
    $region43: #{tpu_custom_call.1} parent=1 // pred_check_branch
      %461 = sbr.rel (0) target = $region45
    $region44: #{tpu_custom_call.1} parent=1 // pred_region
      %462 = dma.done [#allocation4], 16
    $region45: #{tpu_custom_call.1} parent=1 // pred_fallthru
      _
    %463 = vsyncpa [#allocation4], 1
    %464 = vsyncpa [#allocation5], 1

</llo_original>
